<compile_context>
chip_gen: v6e
topology: v6e:2x2x1
jax: 0.10.0
libtpu: 0.0.40
codegen_flags: <defaults>
</compile_context>

<pallas_src>
import jax
import jax.numpy as jnp
from jax.experimental import pallas as pl
from jax.experimental.pallas import tpu as pltpu

LANES = 128
MIN_SPLIT_ROWS = 512      # below this many 128-lane rows, a single tile is used
MIN_DIVISOR_ROWS = 256    # exact-divisor search does not go below this


def _round_up(x, m):
    return ((x + m - 1) // m) * m


def _row_align(dtype):
    # Sublane alignment for the packed input tile: f32 -> 8, bf16 -> 16, int8 -> 32.
    return {4: 8, 2: 16, 1: 32}.get(jnp.dtype(dtype).itemsize, 8)


def _pick_tile_rows(rows, row_align, max_tile_rows):
    """Choose the per-step tile height (in 128-lane rows)."""
    max_tile_rows = max(_round_up(max_tile_rows, row_align), row_align)
    if rows < MIN_SPLIT_ROWS and rows <= max_tile_rows:
        # Tiny input: one tile covers everything (mask handles ragged rows).
        return min(_round_up(rows, row_align), max_tile_rows)
    # Want >= 2 tiles (v7x megacore) with each tile as large as possible.
    target = min(max_tile_rows, _round_up(-(-rows // 2), row_align))
    # Prefer an exact divisor of `rows` (balanced tiles, no masked tail) ...
    c = target
    lo = max(MIN_DIVISOR_ROWS, row_align)
    while c >= lo:
        if rows % c == 0:
            return c
        c -= row_align
    # ... otherwise take the target and mask the partial final block in-kernel.
    return target


def _largest_factor_le_sqrt(r):
    best, f = 1, 1
    while f * f <= r:
        if r % f == 0:
            best = f
        f += 1
    return best


def _make_kernel(tile_rows, valid_rows_last, has_partial):
    def vreduce(x):
        # (tile_rows, 128) -> (8, 128) with pure whole-vreg adds (no XLU).
        x = x.reshape(-1, 8, LANES)
        r = x.shape[0]
        if r >= 32:
            # Two-level reduce keeps the dependent-add chain short for big tiles.
            g = _largest_factor_le_sqrt(r)
            if g > 1:
                x = jnp.sum(x.reshape(g, r // g, 8, LANES), axis=1)
        return jnp.sum(x, axis=0)

    def kernel(p_ref, t_ref, out_ref):
        p = p_ref[...].astype(jnp.float32)
        t = t_ref[...].astype(jnp.float32)

        def emit(p, t):
            # PyTorch BCELoss clamps the log terms at -100 (before any multiply),
            # so zeroed/padded elements contribute exactly 0 to every sum.
            log_p = jnp.maximum(jnp.log(p), jnp.float32(-100.0))
            log_1mp = jnp.maximum(jnp.log(1.0 - p), jnp.float32(-100.0))
            # = -(BCE element); the negation is deferred to the scalar epilogue.
            neg_bce = log_1mp + t * (log_p - log_1mp)
            out_ref[0, 0] = vreduce(neg_bce)   # sum of -(per-element BCE terms)
            out_ref[0, 1] = vreduce(p * t)     # sum(p * t)
            out_ref[0, 2] = vreduce(p + t)     # sum(p) + sum(t), fused
        if not has_partial:
            emit(p, t)
        else:
            is_last = pl.program_id(0) == pl.num_programs(0) - 1

            @pl.when(jnp.logical_not(is_last))
            def _():
                emit(p, t)

            @pl.when(is_last)
            def _():
                # Final block extends past the array: mask the inputs to 0 so the
                # out-of-bounds (garbage) region contributes exactly 0 and never
                # reaches the log (no NaN risk).
                row = jax.lax.broadcasted_iota(jnp.int32, (tile_rows, LANES), 0)
                valid = row < valid_rows_last
                emit(jnp.where(valid, p, jnp.float32(0.0)),
                     jnp.where(valid, t, jnp.float32(0.0)))

    return kernel


def bce_dice_loss(inp, target, *, max_tile_rows=4096):
    """Computes BCEDiceLoss(inp, target) -> scalar (float32)."""
    assert inp.shape == target.shape
    n = int(inp.size)
    assert n > 0

    def _prep(x):
        if jnp.dtype(x.dtype).itemsize > 4:
            x = x.astype(jnp.float32)  # no f64 on TPU
        return x.reshape(-1)

    # Stream inputs in their original (<=32-bit) dtype; cast on vregs in-kernel.
    p_flat = _prep(inp)
    t_flat = _prep(target)

    lane_pad = (-n) % LANES
    if lane_pad:
        # Only pad to a 128-lane multiple (<=127 elems).  Padded zeros contribute
        # exactly 0 to every partial sum (log clamp happens before the multiply).
        p_flat = jnp.pad(p_flat, (0, lane_pad))
        t_flat = jnp.pad(t_flat, (0, lane_pad))
    rows = (n + lane_pad) // LANES

    row_align = max(_row_align(p_flat.dtype), _row_align(t_flat.dtype))
    tile_rows = _pick_tile_rows(rows, row_align, max_tile_rows)
    num_tiles = -(-rows // tile_rows)
    valid_rows_last = rows - (num_tiles - 1) * tile_rows
    has_partial = valid_rows_last != tile_rows

    p2 = p_flat.reshape(rows, LANES)
    t2 = t_flat.reshape(rows, LANES)

    # VMEM budget: 2 inputs x 2 pipeline buffers x tile bytes (+ tiny outputs).
    tile_bytes = tile_rows * LANES * (p2.dtype.itemsize + t2.dtype.itemsize)
    vmem_need = 2 * tile_bytes + 2 * (3 * 8 * LANES * 4)
    cp_kwargs = {}
    if vmem_need > 14 * 1024 * 1024:
        cp_kwargs["vmem_limit_bytes"] = int(vmem_need + (4 << 20))

    partials = pl.pallas_call(
        _make_kernel(tile_rows, valid_rows_last, has_partial),
        out_shape=jax.ShapeDtypeStruct((num_tiles, 3, 8, LANES), jnp.float32),
        grid_spec=pltpu.PrefetchScalarGridSpec(
            num_scalar_prefetch=0,
            grid=(num_tiles,),
            in_specs=[
                pl.BlockSpec((tile_rows, LANES), lambda i: (i, 0)),
                pl.BlockSpec((tile_rows, LANES), lambda i: (i, 0)),
            ],
            out_specs=pl.BlockSpec((1, 3, 8, LANES), lambda i: (i, 0, 0, 0)),
        ),
        compiler_params=pltpu.CompilerParams(
            dimension_semantics=("parallel",), **cp_kwargs),
    )(p2, t2)

    # Tiny epilogue in plain JAX: cross-tile / cross-lane reduce + finalize.
    totals = jnp.sum(partials, axis=(0, 2, 3))          # (3,)
    bce_loss = -totals[0] / jnp.float32(n)               # kernel stored -(BCE terms)
    dice_coef = (2.0 * totals[1] + 1.0) / (totals[2] + 1.0)
    return bce_loss + (1.0 - dice_coef)


def _reference(inp, target):
    p = inp.reshape(-1).astype(jnp.float32)
    t = target.reshape(-1).astype(jnp.float32)
    log_p = jnp.maximum(jnp.log(p), -100.0)
    log_1mp = jnp.maximum(jnp.log(1.0 - p), -100.0)
    bce = jnp.mean(-(t * log_p + (1.0 - t) * log_1mp))
    dice = (2.0 * jnp.sum(p * t) + 1.0) / (jnp.sum(p) + jnp.sum(t) + 1.0)
    return bce + (1.0 - dice)


if __name__ == "__main__":
    key = jax.random.PRNGKey(0)
    k1, k2, k3, k4, k5, k6 = jax.random.split(key, 6)

    # 1) Small test: single full tile, no pad, no mask.
    inp = jax.nn.sigmoid(jax.random.normal(k1, (2, 4, 16, 16), dtype=jnp.float32))
    target = (jax.random.uniform(k2, (2, 4, 16, 16)) > 0.5).astype(jnp.float32)
    loss = jax.block_until_ready(bce_dice_loss(inp, target))
    ref = jax.block_until_ready(_reference(inp, target))
    assert jnp.allclose(loss, ref, rtol=2e-4, atol=2e-5), (loss, ref)

    # 2) PraNet-like mask shape: 3872 rows -> two balanced 1936-row tiles
    #    (megacore-friendly, zero padding, no mask).
    inp2 = jax.nn.sigmoid(jax.random.normal(k3, (4, 1, 352, 352), dtype=jnp.float32))
    target2 = (jax.random.uniform(k4, (4, 1, 352, 352)) > 0.5).astype(jnp.float32)
    loss2 = jax.block_until_ready(bce_dice_loss(inp2, target2))
    ref2 = jax.block_until_ready(_reference(inp2, target2))
    assert jnp.allclose(loss2, ref2, rtol=2e-4, atol=2e-5), (loss2, ref2)

    # 3) Ragged shape: exercises the <=127-element lane pad and the in-kernel
    #    tail mask on the final (partial) block.
    inp3 = jax.nn.sigmoid(jax.random.normal(k5, (1, 1, 260, 257), dtype=jnp.float32))
    target3 = (jax.random.uniform(k6, (1, 1, 260, 257)) > 0.5).astype(jnp.float32)
    loss3 = jax.block_until_ready(bce_dice_loss(inp3, target3))
    ref3 = jax.block_until_ready(_reference(inp3, target3))
    assert jnp.allclose(loss3, ref3, rtol=2e-4, atol=2e-5), (loss3, ref3)

    print("KERNEL_OK")
</pallas_src>

<mosaic_0001>
module attributes {stable_mosaic.version = 11 : i64} {
  func.func @kernel(%arg0: i32, %arg1: memref<16x128xf32, #tpu.memory_space<vmem>>, %arg2: memref<16x128xf32, #tpu.memory_space<vmem>>, %arg3: memref<1x3x8x128xf32, #tpu.memory_space<vmem>>) attributes {dimension_semantics = [#tpu.dimension_semantics<parallel>], iteration_bounds = array<i64: 1>, scalar_prefetch = 0 : i64, scratch_operands = 0 : i64, tpu.core_type = #tpu.core_type<tc>, window_params = [{transform_indices = @transform_0, window_bounds = array<i64: 16, 128>}, {transform_indices = @transform_1, window_bounds = array<i64: 16, 128>}, {transform_indices = @transform_2, window_bounds = array<i64: 1, 3, 8, 128>}]} {
    %c0 = arith.constant 0 : index
    %c0_0 = arith.constant 0 : index
    %0 = vector.load %arg1[%c0, %c0_0] : memref<16x128xf32, #tpu.memory_space<vmem>>, vector<16x128xf32>
    %c0_1 = arith.constant 0 : index
    %c0_2 = arith.constant 0 : index
    %1 = vector.load %arg2[%c0_1, %c0_2] : memref<16x128xf32, #tpu.memory_space<vmem>>, vector<16x128xf32>
    %2 = math.log %0 : vector<16x128xf32>
    %cst = arith.constant -1.000000e+02 : f32
    %3 = vector.broadcast %cst : f32 to vector<16x128xf32>
    %4 = arith.maximumf %2, %3 : vector<16x128xf32>
    %cst_3 = arith.constant 1.000000e+00 : f32
    %5 = vector.broadcast %cst_3 : f32 to vector<16x128xf32>
    %6 = arith.subf %5, %0 : vector<16x128xf32>
    %7 = math.log %6 : vector<16x128xf32>
    %cst_4 = arith.constant -1.000000e+02 : f32
    %8 = vector.broadcast %cst_4 : f32 to vector<16x128xf32>
    %9 = arith.maximumf %7, %8 : vector<16x128xf32>
    %10 = arith.subf %4, %9 : vector<16x128xf32>
    %11 = arith.mulf %1, %10 : vector<16x128xf32>
    %12 = arith.addf %9, %11 : vector<16x128xf32>
    %13 = vector.shape_cast %12 : vector<16x128xf32> to vector<2x8x128xf32>
    %cst_5 = arith.constant dense<0.000000e+00> : vector<8x128xf32>
    %14 = vector.multi_reduction <add>, %13, %cst_5 [0] : vector<2x8x128xf32> to vector<8x128xf32>
    %c0_6 = arith.constant 0 : index
    %c0_7 = arith.constant 0 : index
    %c0_8 = arith.constant 0 : index
    %c0_9 = arith.constant 0 : index
    %15 = vector.load %arg3[%c0_6, %c0_7, %c0_8, %c0_9] : memref<1x3x8x128xf32, #tpu.memory_space<vmem>>, vector<1x1x8x128xf32>
    %16 = vector.shape_cast %15 : vector<1x1x8x128xf32> to vector<8x128xf32>
    %17 = vector.shape_cast %14 : vector<8x128xf32> to vector<1x1x8x128xf32>
    tpu.vector_store %arg3[%c0_6, %c0_7, %c0_8, %c0_9], %17 {strides = array<i32>} : memref<1x3x8x128xf32, #tpu.memory_space<vmem>>, vector<1x1x8x128xf32>,
    %18 = arith.mulf %0, %1 : vector<16x128xf32>
    %19 = vector.shape_cast %18 : vector<16x128xf32> to vector<2x8x128xf32>
    %cst_10 = arith.constant dense<0.000000e+00> : vector<8x128xf32>
    %20 = vector.multi_reduction <add>, %19, %cst_10 [0] : vector<2x8x128xf32> to vector<8x128xf32>
    %c0_11 = arith.constant 0 : index
    %c1 = arith.constant 1 : index
    %c0_12 = arith.constant 0 : index
    %c0_13 = arith.constant 0 : index
    %21 = vector.load %arg3[%c0_11, %c1, %c0_12, %c0_13] : memref<1x3x8x128xf32, #tpu.memory_space<vmem>>, vector<1x1x8x128xf32>
    %22 = vector.shape_cast %21 : vector<1x1x8x128xf32> to vector<8x128xf32>
    %23 = vector.shape_cast %20 : vector<8x128xf32> to vector<1x1x8x128xf32>
    tpu.vector_store %arg3[%c0_11, %c1, %c0_12, %c0_13], %23 {strides = array<i32>} : memref<1x3x8x128xf32, #tpu.memory_space<vmem>>, vector<1x1x8x128xf32>,
    %24 = arith.addf %0, %1 : vector<16x128xf32>
    %25 = vector.shape_cast %24 : vector<16x128xf32> to vector<2x8x128xf32>
    %cst_14 = arith.constant dense<0.000000e+00> : vector<8x128xf32>
    %26 = vector.multi_reduction <add>, %25, %cst_14 [0] : vector<2x8x128xf32> to vector<8x128xf32>
    %c0_15 = arith.constant 0 : index
    %c2 = arith.constant 2 : index
    %c0_16 = arith.constant 0 : index
    %c0_17 = arith.constant 0 : index
    %27 = vector.load %arg3[%c0_15, %c2, %c0_16, %c0_17] : memref<1x3x8x128xf32, #tpu.memory_space<vmem>>, vector<1x1x8x128xf32>
    %28 = vector.shape_cast %27 : vector<1x1x8x128xf32> to vector<8x128xf32>
    %29 = vector.shape_cast %26 : vector<8x128xf32> to vector<1x1x8x128xf32>
    tpu.vector_store %arg3[%c0_15, %c2, %c0_16, %c0_17], %29 {strides = array<i32>} : memref<1x3x8x128xf32, #tpu.memory_space<vmem>>, vector<1x1x8x128xf32>,
    return
  }
  func.func @transform_0(%arg0: i32) -> (i32, i32) {
    %c0_i32 = arith.constant 0 : i32
    %c0_i32_0 = arith.constant 0 : i32
    return %arg0, %c0_i32 : i32, i32
  }
  func.func @transform_1(%arg0: i32) -> (i32, i32) {
    %c0_i32 = arith.constant 0 : i32
    %c0_i32_0 = arith.constant 0 : i32
    return %arg0, %c0_i32 : i32, i32
  }
  func.func @transform_2(%arg0: i32) -> (i32, i32, i32, i32) {
    %c0_i32 = arith.constant 0 : i32
    %c0_i32_0 = arith.constant 0 : i32
    %c0_i32_1 = arith.constant 0 : i32
    %c0_i32_2 = arith.constant 0 : i32
    return %arg0, %c0_i32, %c0_i32_0, %c0_i32_1 : i32, i32, i32, i32
  }
}

</mosaic_0001>

<llo_original>
// kernel: tpu_custom_call.1
$region0: #{tpu_custom_call.1}
  #allocation0 [shape = 'u32[]', space=smem, size = 0x4, offset = 0x4, fixed_abs, tag = 'smem constant byte address 0x4 - core index']
  #allocation1 [shape = 'u32[144,128]{1,0:T(1,128)}', space=vmem, size = 0x12000, scoped, tag = 'internal scratch']
  %s0 = inlined_call_operand.hbm [shape: f32[16,128], index: 0, kind: input, shape index: {}]
  %s1 = inlined_call_operand.hbm [shape: f32[16,128], index: 1, kind: input, shape index: {}]
  %s2 = inlined_call_operand.hbm [shape: f32[1,3,8,128], index: 2, kind: output, shape index: {}]
  %s3 = sld [smem:[#allocation0]]
  $region26: #{tpu_custom_call.1} parent=0
    _
  %s5 = ssub.s32 1, %s3
  %s6 = scalar_select 0, %s5, %s3
  $region1: #{tpu_custom_call.1} parent=0
    #allocation2 [shape = 'u8[8192]{0}', space=vmem, size = 0x2000, scoped, tag = 'input window, operand 0, single buffered']
    #allocation3 [shape = 's32[1]{0}', space=sflag, size = 0x4, scoped, tag = 'scoped memory for tpu_custom_call.1']
    #allocation4 [shape = 's32[1]{0}', space=sflag, size = 0x4, scoped, tag = 'scoped memory for tpu_custom_call.1']
    #allocation5 [shape = 'u8[8192]{0}', space=vmem, size = 0x2000, scoped, tag = 'input window, operand 1, single buffered']
    #allocation6 [shape = 's32[1]{0}', space=sflag, size = 0x4, scoped, tag = 'scoped memory for tpu_custom_call.1']
    #allocation7 [shape = 'u8[12288]{0}', space=vmem, size = 0x3000, scoped, tag = 'output window, operand 0, single buffered']
    %7 = vsyncpa [#allocation3], 0
    %8 = vsyncpa [#allocation6], 0
    %9 = vsyncpa [#allocation4], 0
    // Predicated region
    $region2: #{tpu_custom_call.1} parent=1 // pred_check
      _
    $region3: #{tpu_custom_call.1} parent=1 // pred_check_branch
      %11 = sbr.rel (0) target = $region5
    $region4: #{tpu_custom_call.1} parent=1 // pred_region
      %s13 = ssub.s32 256, 256
      %14 = vsyncadd [#allocation3], %s13
      %s15 = sshll.u32 [#allocation2], 4
      %s16 = int_to_ptr.vmem [resolvable:$true] %s15
      %21 = dma.hbm_to_vmem [thread:$0]  %s0, 256, %s16, [#allocation3], 128, 128, 8
    $region5: #{tpu_custom_call.1} parent=1 // pred_fallthru
      _
    // Predicated region
    $region6: #{tpu_custom_call.1} parent=1 // pred_check
      _
    $region7: #{tpu_custom_call.1} parent=1 // pred_check_branch
      %23 = sbr.rel (0) target = $region9
    $region8: #{tpu_custom_call.1} parent=1 // pred_region
      %s25 = ssub.s32 256, 256
      %26 = vsyncadd [#allocation6], %s25
      %s27 = sshll.u32 [#allocation5], 4
      %s28 = int_to_ptr.vmem [resolvable:$true] %s27
      %33 = dma.hbm_to_vmem [thread:$0]  %s1, 256, %s28, [#allocation6], 128, 128, 8
    $region9: #{tpu_custom_call.1} parent=1 // pred_fallthru
      _
    // Predicated region
    $region10: #{tpu_custom_call.1} parent=1 // pred_check
      _
    $region11: #{tpu_custom_call.1} parent=1 // pred_check_branch
      %35 = sbr.rel (0) target = $region13
    $region12: #{tpu_custom_call.1} parent=1 // pred_region
      %36 = dma.done [#allocation3], 256
    $region13: #{tpu_custom_call.1} parent=1 // pred_fallthru
      _
    // Predicated region
    $region14: #{tpu_custom_call.1} parent=1 // pred_check
      _
    $region15: #{tpu_custom_call.1} parent=1 // pred_check_branch
      %38 = sbr.rel (0) target = $region17
    $region16: #{tpu_custom_call.1} parent=1 // pred_region
      %39 = dma.done [#allocation6], 256
    $region17: #{tpu_custom_call.1} parent=1 // pred_fallthru
      _
    %v40 = vld [vmem:[#allocation2] sm:$0xff]
    %v41 = vld [vmem:[#allocation2 + $0x8] sm:$0xff]
    %v42 = vld [vmem:[#allocation5] sm:$0xff]
    %v43 = vld [vmem:[#allocation5 + $0x8] sm:$0xff]
    %v44 = vlog2.pop %v40
    %v45 = vmul.f32 %v44, 0.6931472
    %v46 = vlog2.pop %v41
    %v47 = vmul.f32 %v46, 0.6931472
    %v48 = vmax.f32 %v45, -100.0
    %v49 = vmax.f32 %v47, -100.0
    %v50 = vsub.f32 1.0, %v40
    %v51 = vsub.f32 1.0, %v41
    %v52 = vlog2.pop %v50
    %v53 = vmul.f32 %v52, 0.6931472
    %v54 = vlog2.pop %v51
    %v55 = vmul.f32 %v54, 0.6931472
    %v56 = vmax.f32 %v53, -100.0
    %v57 = vmax.f32 %v55, -100.0
    %v58 = vsub.f32 %v48, %v56
    %v59 = vsub.f32 %v49, %v57
    %v60 = vmul.f32 %v42, %v58
    %v61 = vmul.f32 %v43, %v59
    %v62 = vadd.f32 %v56, %v60
    %v63 = vadd.f32 %v57, %v61
    %v64 = vadd.f32 %v62, %v63
    %65 = vst [vmem:[#allocation7] sm:$0xff] %v64
    %v66 = vmul.f32 %v40, %v42
    %v67 = vmul.f32 %v41, %v43
    %v68 = vadd.f32 %v66, %v67
    %s69 = scalar_lea.vmem [#allocation7], 8
    %70 = vst [vmem:[%s69] sm:$0xff] %v68
    %v71 = vadd.f32 %v40, %v42
    %v72 = vadd.f32 %v41, %v43
    %v73 = vadd.f32 %v71, %v72
    %s74 = scalar_lea.vmem [#allocation7], 16
    %75 = vst [vmem:[%s74] sm:$0xff] %v73
    // Predicated region
    $region18: #{tpu_custom_call.1} parent=1 // pred_check
      _
    $region19: #{tpu_custom_call.1} parent=1 // pred_check_branch
      %77 = sbr.rel (0) target = $region21
    $region20: #{tpu_custom_call.1} parent=1 // pred_region
      %s79 = ssub.s32 384, 384
      %80 = vsyncadd [#allocation4], %s79
      %s81 = sshll.u32 [#allocation7], 4
      %s82 = int_to_ptr.vmem [resolvable:$true] %s81
      %87 = dma.vmem_to_hbm [thread:$0]  %s82, 384, %s2, [#allocation4], 128, 128, 8
    $region21: #{tpu_custom_call.1} parent=1 // pred_fallthru
      _
    // Predicated region
    $region22: #{tpu_custom_call.1} parent=1 // pred_check
      _
    $region23: #{tpu_custom_call.1} parent=1 // pred_check_branch
      %89 = sbr.rel (0) target = $region25
    $region24: #{tpu_custom_call.1} parent=1 // pred_region
      %90 = dma.done [#allocation4], 384
    $region25: #{tpu_custom_call.1} parent=1 // pred_fallthru
      _
    %91 = vsyncpa [#allocation3], 1
    %92 = vsyncpa [#allocation6], 1
    %93 = vsyncpa [#allocation4], 1

</llo_original>
